<compile_context>
chip_gen: v7x
topology: tpu7x:2x2x1
jax: 0.10.0
libtpu: 0.0.40
codegen_flags: <defaults>
</compile_context>

<pallas_src>
import functools

import jax
import jax.numpy as jnp
from jax.experimental import pallas as pl
from jax.experimental.pallas import tpu as pltpu

_LANE = 128
_CIN_PAD = 8          # 3 (2D feat) + 3 (3D feat) channels, zero padded to 8


def _round_up(x, m):
    return ((x + m - 1) // m) * m


def _choose_tile(p, target=512):
    """Token tile per batch row: multiple of 16 (bf16 sublane pack), <= target."""
    if p >= target:
        tile = target
    else:
        tile = _round_up(max(p, 16), 16)
    return _round_up(p, tile), tile


# -----------------------------------------------------------------------------
# Fused Pallas kernel: backbone 1x1 proj -> ChannelEncoder -> pred -> box decode
# -----------------------------------------------------------------------------
def _yowo_fused_kernel(x_ref, anc_ref,
                       w_in_ref, b_in_ref,
                       w_enc_ref, b_enc_ref,
                       wp_ref, bp_ref,
                       out_ref,
                       *, stride, num_anchors, num_classes):
    """One (batch, token-tile) grid cell.

    x_ref   : [1, T, 8]    bf16  packed tokens [feat2d(3) | feat3d(3) | pad(2)]
    anc_ref : [T, 4K]      f32   per-token anchors (x, y, w, h) per anchor,
                                 laid out to match the reg columns of pred
    out_ref : [1, T, 128]  f32   [conf | cls | reg | decoded box | pad]
    """
    K = num_anchors
    C = num_classes
    reg_start = K * (1 + C)          # 63 for K=3, C=20
    raw_dim = K * (1 + C + 4)        # 75

    x = x_ref[0]                                               # [T, 8] bf16

    # Stand-in backbone heads: block-diagonal 1x1 conv (2D + 3D) + ReLU.
    f = jnp.dot(x, w_in_ref[...], preferred_element_type=jnp.float32)
    f = jnp.maximum(f + b_in_ref[...], 0.0)                    # [T, bk2+bk3] f32

    # ChannelEncoder: 1x1 conv on concat([feat2d, feat3d]) + LeakyReLU(0.1).
    h = jnp.dot(f.astype(jnp.bfloat16), w_enc_ref[...],
                preferred_element_type=jnp.float32) + b_enc_ref[...]
    h = jnp.where(h > 0, h, 0.1 * h)                           # [T, head_dim] f32

    # pred: Conv2d(head_dim, K*(1+C+4), kernel_size=1), lane-padded to 128.
    p = jnp.dot(h.astype(jnp.bfloat16), wp_ref[...],
                preferred_element_type=jnp.float32) + bp_ref[...]   # [T, 128] f32

    # Fused decode_bbox on the reg columns (sigmoid/exp ride the idle EUP slot).
    reg = p[:, reg_start:reg_start + 4 * K]                    # [T, 4K]
    anc = anc_ref[...]                                         # [T, 4K]
    ctr = jax.nn.sigmoid(reg) * float(stride) + anc            # valid at xy lanes
    # Clamp keeps exp finite for untrained / extreme regression outputs.
    size = jnp.exp(jnp.minimum(reg, 20.0)) * anc               # valid at wh lanes

    boxes = []
    for k in range(K):                                         # static unroll, K small
        cxy = ctr[:, 4 * k:4 * k + 2]
        wh = size[:, 4 * k + 2:4 * k + 4]
        boxes.append(jnp.concatenate([cxy - 0.5 * wh, cxy + 0.5 * wh], axis=-1))
    box = jnp.concatenate(boxes, axis=-1)                      # [T, 4K] (x1,y1,x2,y2)*K

    pad_w = _LANE - raw_dim - 4 * K
    pad = jnp.zeros((p.shape[0], pad_w), jnp.float32)
    # Single dense 128-lane store: raw pred | decoded boxes | zero pad.
    out_ref[0] = jnp.concatenate([p[:, :raw_dim], box, pad], axis=-1)


# -----------------------------------------------------------------------------
# YOWO wrapper (inference path, trainable=False)
# -----------------------------------------------------------------------------
class YOWOPallas:
    def __init__(self, img_size=16, stride=8,
                 anchor_size=((8.0, 8.0), (12.0, 16.0), (16.0, 12.0)),
                 num_classes=20, head_dim=32, bk_dim_2d=16, bk_dim_3d=16,
                 seed=0, token_tile=512):
        self.img_size = img_size
        self.stride = stride
        self.num_classes = num_classes
        self.anchor_size = jnp.asarray(anchor_size, dtype=jnp.float32)
        self.num_anchors = self.anchor_size.shape[0]
        self.head_dim = head_dim
        self.bk_dim_2d = bk_dim_2d
        self.bk_dim_3d = bk_dim_3d
        self.token_tile = token_tile
        self.out_dim = self.num_anchors * (1 + num_classes + 4)
        assert self.out_dim + 4 * self.num_anchors <= _LANE, "pred+box must fit 128 lanes"

        # Anchor table [P, 4K] aligned with the reg column layout of pred.
        self.anchor_boxes = self._generate_anchors(img_size)                    # [M, 4]
        fh = fw = img_size // stride
        self.num_tokens = fh * fw
        self.anc_table = self.anchor_boxes.reshape(self.num_tokens,
                                                   4 * self.num_anchors)        # [P, 4K]

        # Deterministic synthetic parameters (no checkpoint load).
        key = jax.random.PRNGKey(seed)
        ks = jax.random.split(key, 10)

        def init(k, shape, scale=0.1):
            return (scale * jax.random.normal(k, shape)).astype(jnp.float32)

        w2d = init(ks[0], (3, bk_dim_2d))
        b2d = init(ks[1], (bk_dim_2d,))
        w3d = init(ks[2], (3, bk_dim_3d))
        b3d = init(ks[3], (bk_dim_3d,))
        we2 = init(ks[4], (bk_dim_2d, head_dim))
        we3 = init(ks[5], (bk_dim_3d, head_dim))
        be = init(ks[6], (head_dim,))
        wp = init(ks[7], (head_dim, self.out_dim))
        bp = init(ks[8], (self.out_dim,))

        # Pack into kernel-friendly, lane-dense forms.
        in_dim = bk_dim_2d + bk_dim_3d
        w_in = jnp.zeros((_CIN_PAD, in_dim), jnp.float32)
        w_in = w_in.at[0:3, :bk_dim_2d].set(w2d)
        w_in = w_in.at[3:6, bk_dim_2d:].set(w3d)                 # block-diagonal
        b_in = jnp.concatenate([b2d, b3d]).reshape(1, in_dim)

        w_enc = jnp.concatenate([we2, we3], axis=0)              # concat == split-weight
        b_enc = be.reshape(1, head_dim)

        wp_pad = jnp.zeros((head_dim, _LANE), jnp.float32).at[:, :self.out_dim].set(wp)
        bp_pad = jnp.zeros((1, _LANE), jnp.float32).at[:, :self.out_dim].set(bp)

        # bf16 matmul operands (f32 accumulation in-kernel), f32 biases.
        self.w_in = w_in.astype(jnp.bfloat16)
        self.b_in = b_in
        self.w_enc = w_enc.astype(jnp.bfloat16)
        self.b_enc = b_enc
        self.wp_pad = wp_pad.astype(jnp.bfloat16)
        self.bp_pad = bp_pad

    def _generate_anchors(self, img_size):
        fh = fw = img_size // self.stride
        ys, xs = jnp.meshgrid(jnp.arange(fh), jnp.arange(fw), indexing="ij")
        anchor_xy = jnp.stack([xs, ys], axis=-1).astype(jnp.float32).reshape(-1, 2)
        anchor_xy = jnp.repeat(anchor_xy[:, None, :], self.num_anchors, axis=1)
        anchor_xy = anchor_xy * float(self.stride)                        # [P, K, 2]
        anchor_wh = jnp.tile(self.anchor_size[None, :, :], (fh * fw, 1, 1))
        anchor_boxes = jnp.concatenate([anchor_xy, anchor_wh], axis=-1)   # [P, K, 4]
        return anchor_boxes.reshape(-1, 4)                                # [M, 4]

    def __call__(self, video_clips):
        """video_clips: [B, 3, T, H, W] float32 (NCTHW, like PyTorch)."""
        B, Cin, T, H, W = video_clips.shape
        s = self.stride
        fh, fw = H // s, W // s
        P = fh * fw
        K, C = self.num_anchors, self.num_classes
        assert P == self.num_tokens, "input spatial size must match img_size"

        key_frame = video_clips[:, :, -1, :, :]                           # [B, 3, H, W]

        # TODO(synk): build_backbone_2d / build_backbone_3d are external model
        # builders not defined in the reference; stand-in = stride x stride average
        # pooling here followed by the in-kernel block-diagonal 1x1 projections.
        pooled2d = key_frame.reshape(B, Cin, fh, s, fw, s).mean(axis=(3, 5))
        pooled3d = video_clips.mean(axis=2).reshape(B, Cin, fh, s, fw, s).mean(axis=(3, 5))

        # Token layout [B, P, 3+3], zero padded to 8 channels, bf16 for the MXU.
        x2 = pooled2d.transpose(0, 2, 3, 1)                               # [B, fh, fw, 3]
        x3 = pooled3d.transpose(0, 2, 3, 1)
        x = jnp.concatenate([x2, x3], axis=-1).reshape(B, P, 2 * Cin)
        x = jnp.pad(x, ((0, 0), (0, 0), (0, _CIN_PAD - 2 * Cin)))
        x = x.astype(jnp.bfloat16)

        # Tile / pad the token axis.
        P_pad, tile_p = _choose_tile(P, self.token_tile)
        if P_pad != P:
            x = jnp.pad(x, ((0, 0), (0, P_pad - P), (0, 0)))
        anc = self.anc_table
        if P_pad != P:
            anc = jnp.pad(anc, ((0, P_pad - P), (0, 0)))

        in_dim = self.bk_dim_2d + self.bk_dim_3d
        n_tok = B * P_pad
        cost = pl.CostEstimate(
            flops=2 * n_tok * (_CIN_PAD * in_dim + in_dim * self.head_dim
                               + self.head_dim * _LANE),
            transcendentals=n_tok * 8 * K,
            bytes_accessed=int(n_tok * (_CIN_PAD * 2 + 4 * K * 4 + _LANE * 4)
                               + self.w_in.size * 2 + self.w_enc.size * 2
                               + self.wp_pad.size * 2
                               + (self.b_in.size + self.b_enc.size + self.bp_pad.size) * 4),
        )

        kernel = functools.partial(_yowo_fused_kernel, stride=self.stride,
                                   num_anchors=K, num_classes=C)

        out = pl.pallas_call(
            kernel,
            out_shape=jax.ShapeDtypeStruct((B, P_pad, _LANE), jnp.float32),
            grid=(B, P_pad // tile_p),
            in_specs=[
                pl.BlockSpec((1, tile_p, _CIN_PAD), lambda b, j: (b, j, 0)),   # tokens
                pl.BlockSpec((tile_p, 4 * K), lambda b, j: (j, 0)),            # anchors
                pl.BlockSpec(self.w_in.shape, lambda b, j: (0, 0)),
                pl.BlockSpec(self.b_in.shape, lambda b, j: (0, 0)),
                pl.BlockSpec(self.w_enc.shape, lambda b, j: (0, 0)),
                pl.BlockSpec(self.b_enc.shape, lambda b, j: (0, 0)),
                pl.BlockSpec(self.wp_pad.shape, lambda b, j: (0, 0)),
                pl.BlockSpec(self.bp_pad.shape, lambda b, j: (0, 0)),
            ],
            out_specs=pl.BlockSpec((1, tile_p, _LANE), lambda b, j: (b, j, 0)),
            compiler_params=pltpu.CompilerParams(
                dimension_semantics=("parallel", "parallel")),
            cost_estimate=cost,
        )(x, anc, self.w_in, self.b_in, self.w_enc, self.b_enc,
          self.wp_pad, self.bp_pad)

        out = out[:, :P, :]                                               # [B, P, 128]
        raw = K * (1 + C + 4)
        conf_pred = out[..., :K].reshape(B, P * K, 1)
        cls_pred = out[..., K:K * (1 + C)].reshape(B, P * K, C)
        reg_pred = out[..., K * (1 + C):raw].reshape(B, P * K, 4)
        box_pred = out[..., raw:raw + 4 * K].reshape(B, P * K, 4)

        # TODO(synk): topk / conf-threshold / per-class numpy NMS of
        # post_process_one_hot / post_process_multi_hot are data-dependent host
        # loops with no clean Pallas equivalent; stop at the decoded tensors.
        return {
            "conf_pred": conf_pred,   # [B, M, 1]
            "cls_pred": cls_pred,     # [B, M, C]
            "reg_pred": reg_pred,     # [B, M, 4]
            "box_pred": box_pred,     # [B, M, 4] (x1, y1, x2, y2) in pixels
        }


if __name__ == "__main__":
    key = jax.random.PRNGKey(0)
    B, T, H, W = 2, 8, 16, 16
    video_clips = jax.random.normal(key, (B, 3, T, H, W), dtype=jnp.float32)

    model = YOWOPallas(img_size=H, stride=8, num_classes=20,
                       head_dim=32, bk_dim_2d=16, bk_dim_3d=16)
    out = model(video_clips)
    jax.block_until_ready(out)

    M = (H // 8) * (W // 8) * 3
    assert out["conf_pred"].shape == (B, M, 1)
    assert out["cls_pred"].shape == (B, M, 20)
    assert out["reg_pred"].shape == (B, M, 4)
    assert out["box_pred"].shape == (B, M, 4)
    assert bool(jnp.all(jnp.isfinite(out["box_pred"])))
    print("KERNEL_OK")
</pallas_src>

<mosaic_0001>
module attributes {stable_mosaic.version = 11 : i64} {
  func.func @_yowo_fused_kernel(%arg0: i32, %arg1: i32, %arg2: memref<1x16x8xbf16, #tpu.memory_space<vmem>>, %arg3: memref<16x12xf32, #tpu.memory_space<vmem>>, %arg4: memref<8x32xbf16, #tpu.memory_space<vmem>>, %arg5: memref<1x32xf32, #tpu.memory_space<vmem>>, %arg6: memref<32x32xbf16, #tpu.memory_space<vmem>>, %arg7: memref<1x32xf32, #tpu.memory_space<vmem>>, %arg8: memref<32x128xbf16, #tpu.memory_space<vmem>>, %arg9: memref<1x128xf32, #tpu.memory_space<vmem>>, %arg10: memref<1x16x128xf32, #tpu.memory_space<vmem>>) attributes {dimension_semantics = [#tpu.dimension_semantics<parallel>, #tpu.dimension_semantics<parallel>], iteration_bounds = array<i64: 2, 1>, scalar_prefetch = 0 : i64, scratch_operands = 0 : i64, tpu.core_type = #tpu.core_type<tc>, window_params = [{transform_indices = @transform_0, window_bounds = array<i64: 1, 16, 8>}, {transform_indices = @transform_1, window_bounds = array<i64: 16, 12>}, {pipeline_mode = #tpu.pipeline_mode<synchronous>, transform_indices = @transform_2, window_bounds = array<i64: 8, 32>}, {pipeline_mode = #tpu.pipeline_mode<synchronous>, transform_indices = @transform_3, window_bounds = array<i64: 1, 32>}, {pipeline_mode = #tpu.pipeline_mode<synchronous>, transform_indices = @transform_4, window_bounds = array<i64: 32, 32>}, {pipeline_mode = #tpu.pipeline_mode<synchronous>, transform_indices = @transform_5, window_bounds = array<i64: 1, 32>}, {pipeline_mode = #tpu.pipeline_mode<synchronous>, transform_indices = @transform_6, window_bounds = array<i64: 32, 128>}, {pipeline_mode = #tpu.pipeline_mode<synchronous>, transform_indices = @transform_7, window_bounds = array<i64: 1, 128>}, {transform_indices = @transform_8, window_bounds = array<i64: 1, 16, 128>}]} {
    %c0 = arith.constant 0 : index
    %c0_0 = arith.constant 0 : index
    %c0_1 = arith.constant 0 : index
    %0 = vector.load %arg2[%c0, %c0_0, %c0_1] : memref<1x16x8xbf16, #tpu.memory_space<vmem>>, vector<1x16x8xbf16>
    %1 = vector.shape_cast %0 : vector<1x16x8xbf16> to vector<16x8xbf16>
    %c0_2 = arith.constant 0 : index
    %c0_3 = arith.constant 0 : index
    %2 = vector.load %arg4[%c0_2, %c0_3] : memref<8x32xbf16, #tpu.memory_space<vmem>>, vector<8x32xbf16>
    %cst = arith.constant dense<0.000000e+00> : vector<16x32xf32>
    %3 = tpu.matmul %1, %2, %cst {dimension_numbers = #tpu.dot_dimension_numbers<[1], [0], [0], [1], [0, 0, 1, 1], [], []>} : vector<16x8xbf16>, vector<8x32xbf16>, vector<16x32xf32> -> vector<16x32xf32>
    %c0_4 = arith.constant 0 : index
    %c0_5 = arith.constant 0 : index
    %4 = vector.load %arg5[%c0_4, %c0_5] : memref<1x32xf32, #tpu.memory_space<vmem>>, vector<1x32xf32>
    %5 = vector.broadcast %4 : vector<1x32xf32> to vector<16x32xf32>
    %6 = arith.addf %3, %5 : vector<16x32xf32>
    %cst_6 = arith.constant 0.000000e+00 : f32
    %7 = vector.broadcast %cst_6 : f32 to vector<16x32xf32>
    %8 = arith.maximumf %6, %7 : vector<16x32xf32>
    %9 = arith.truncf %8 : vector<16x32xf32> to vector<16x32xbf16>
    %c0_7 = arith.constant 0 : index
    %c0_8 = arith.constant 0 : index
    %10 = vector.load %arg6[%c0_7, %c0_8] : memref<32x32xbf16, #tpu.memory_space<vmem>>, vector<32x32xbf16>
    %cst_9 = arith.constant dense<0.000000e+00> : vector<16x32xf32>
    %11 = tpu.matmul %9, %10, %cst_9 {dimension_numbers = #tpu.dot_dimension_numbers<[1], [0], [0], [1], [0, 0, 1, 1], [], []>} : vector<16x32xbf16>, vector<32x32xbf16>, vector<16x32xf32> -> vector<16x32xf32>
    %c0_10 = arith.constant 0 : index
    %c0_11 = arith.constant 0 : index
    %12 = vector.load %arg7[%c0_10, %c0_11] : memref<1x32xf32, #tpu.memory_space<vmem>>, vector<1x32xf32>
    %13 = vector.broadcast %12 : vector<1x32xf32> to vector<16x32xf32>
    %14 = arith.addf %11, %13 : vector<16x32xf32>
    %cst_12 = arith.constant 0.000000e+00 : f32
    %15 = vector.broadcast %cst_12 : f32 to vector<16x32xf32>
    %16 = arith.cmpf ogt, %14, %15 : vector<16x32xf32>
    %cst_13 = arith.constant 1.000000e-01 : f32
    %17 = vector.broadcast %cst_13 : f32 to vector<16x32xf32>
    %18 = arith.mulf %17, %14 : vector<16x32xf32>
    %19 = arith.select %16, %14, %18 : vector<16x32xi1>, vector<16x32xf32>
    %20 = arith.truncf %19 : vector<16x32xf32> to vector<16x32xbf16>
    %c0_14 = arith.constant 0 : index
    %c0_15 = arith.constant 0 : index
    %21 = vector.load %arg8[%c0_14, %c0_15] : memref<32x128xbf16, #tpu.memory_space<vmem>>, vector<32x128xbf16>
    %cst_16 = arith.constant dense<0.000000e+00> : vector<16x128xf32>
    %22 = tpu.matmul %20, %21, %cst_16 {dimension_numbers = #tpu.dot_dimension_numbers<[1], [0], [0], [1], [0, 0, 1, 1], [], []>} : vector<16x32xbf16>, vector<32x128xbf16>, vector<16x128xf32> -> vector<16x128xf32>
    %c0_17 = arith.constant 0 : index
    %c0_18 = arith.constant 0 : index
    %23 = vector.load %arg9[%c0_17, %c0_18] : memref<1x128xf32, #tpu.memory_space<vmem>>, vector<1x128xf32>
    %24 = vector.broadcast %23 : vector<1x128xf32> to vector<16x128xf32>
    %25 = arith.addf %22, %24 : vector<16x128xf32>
    %26 = vector.extract_strided_slice %25 {offsets = [0, 63], sizes = [16, 12], strides = [1, 1]} : vector<16x128xf32> to vector<16x12xf32>
    %c0_19 = arith.constant 0 : index
    %c0_20 = arith.constant 0 : index
    %27 = vector.load %arg3[%c0_19, %c0_20] : memref<16x12xf32, #tpu.memory_space<vmem>>, vector<16x12xf32>
    %28 = arith.negf %26 : vector<16x12xf32>
    %29 = math.exp %28 : vector<16x12xf32>
    %cst_21 = arith.constant 1.000000e+00 : f32
    %30 = vector.broadcast %cst_21 : f32 to vector<16x12xf32>
    %31 = arith.addf %30, %29 : vector<16x12xf32>
    %32 = arith.divf %30, %31 : vector<16x12xf32>
    %cst_22 = arith.constant 8.000000e+00 : f32
    %33 = vector.broadcast %cst_22 : f32 to vector<16x12xf32>
    %34 = arith.mulf %32, %33 : vector<16x12xf32>
    %35 = arith.addf %34, %27 : vector<16x12xf32>
    %cst_23 = arith.constant 2.000000e+01 : f32
    %36 = vector.broadcast %cst_23 : f32 to vector<16x12xf32>
    %37 = arith.minimumf %26, %36 : vector<16x12xf32>
    %38 = math.exp %37 : vector<16x12xf32>
    %39 = arith.mulf %38, %27 : vector<16x12xf32>
    %40 = vector.extract_strided_slice %35 {offsets = [0, 0], sizes = [16, 2], strides = [1, 1]} : vector<16x12xf32> to vector<16x2xf32>
    %41 = vector.extract_strided_slice %39 {offsets = [0, 2], sizes = [16, 2], strides = [1, 1]} : vector<16x12xf32> to vector<16x2xf32>
    %cst_24 = arith.constant 5.000000e-01 : f32
    %42 = vector.broadcast %cst_24 : f32 to vector<16x2xf32>
    %43 = arith.mulf %42, %41 : vector<16x2xf32>
    %44 = arith.subf %40, %43 : vector<16x2xf32>
    %cst_25 = arith.constant 5.000000e-01 : f32
    %45 = vector.broadcast %cst_25 : f32 to vector<16x2xf32>
    %46 = arith.mulf %45, %41 : vector<16x2xf32>
    %47 = arith.addf %40, %46 : vector<16x2xf32>
    %48 = tpu.concatenate %44, %47 in 1 : vector<16x2xf32>, vector<16x2xf32> -> vector<16x4xf32>
    %49 = vector.extract_strided_slice %35 {offsets = [0, 4], sizes = [16, 2], strides = [1, 1]} : vector<16x12xf32> to vector<16x2xf32>
    %50 = vector.extract_strided_slice %39 {offsets = [0, 6], sizes = [16, 2], strides = [1, 1]} : vector<16x12xf32> to vector<16x2xf32>
    %cst_26 = arith.constant 5.000000e-01 : f32
    %51 = vector.broadcast %cst_26 : f32 to vector<16x2xf32>
    %52 = arith.mulf %51, %50 : vector<16x2xf32>
    %53 = arith.subf %49, %52 : vector<16x2xf32>
    %cst_27 = arith.constant 5.000000e-01 : f32
    %54 = vector.broadcast %cst_27 : f32 to vector<16x2xf32>
    %55 = arith.mulf %54, %50 : vector<16x2xf32>
    %56 = arith.addf %49, %55 : vector<16x2xf32>
    %57 = tpu.concatenate %53, %56 in 1 : vector<16x2xf32>, vector<16x2xf32> -> vector<16x4xf32>
    %58 = vector.extract_strided_slice %35 {offsets = [0, 8], sizes = [16, 2], strides = [1, 1]} : vector<16x12xf32> to vector<16x2xf32>
    %59 = vector.extract_strided_slice %39 {offsets = [0, 10], sizes = [16, 2], strides = [1, 1]} : vector<16x12xf32> to vector<16x2xf32>
    %cst_28 = arith.constant 5.000000e-01 : f32
    %60 = vector.broadcast %cst_28 : f32 to vector<16x2xf32>
    %61 = arith.mulf %60, %59 : vector<16x2xf32>
    %62 = arith.subf %58, %61 : vector<16x2xf32>
    %cst_29 = arith.constant 5.000000e-01 : f32
    %63 = vector.broadcast %cst_29 : f32 to vector<16x2xf32>
    %64 = arith.mulf %63, %59 : vector<16x2xf32>
    %65 = arith.addf %58, %64 : vector<16x2xf32>
    %66 = tpu.concatenate %62, %65 in 1 : vector<16x2xf32>, vector<16x2xf32> -> vector<16x4xf32>
    %67 = tpu.concatenate %48, %57, %66 in 1 : vector<16x4xf32>, vector<16x4xf32>, vector<16x4xf32> -> vector<16x12xf32>
    %cst_30 = arith.constant 0.000000e+00 : f32
    %68 = vector.broadcast %cst_30 : f32 to vector<16x41xf32>
    %69 = vector.extract_strided_slice %25 {offsets = [0, 0], sizes = [16, 75], strides = [1, 1]} : vector<16x128xf32> to vector<16x75xf32>
    %70 = tpu.concatenate %69, %67, %68 in 1 : vector<16x75xf32>, vector<16x12xf32>, vector<16x41xf32> -> vector<16x128xf32>
    %c0_31 = arith.constant 0 : index
    %c0_32 = arith.constant 0 : index
    %c0_33 = arith.constant 0 : index
    %71 = vector.load %arg10[%c0_31, %c0_32, %c0_33] : memref<1x16x128xf32, #tpu.memory_space<vmem>>, vector<1x16x128xf32>
    %72 = vector.shape_cast %71 : vector<1x16x128xf32> to vector<16x128xf32>
    %73 = vector.shape_cast %70 : vector<16x128xf32> to vector<1x16x128xf32>
    tpu.vector_store %arg10[%c0_31, %c0_32, %c0_33], %73 {strides = array<i32>} : memref<1x16x128xf32, #tpu.memory_space<vmem>>, vector<1x16x128xf32>,
    return
  }
  func.func @transform_0(%arg0: i32, %arg1: i32) -> (i32, i32, i32) {
    %c0_i32 = arith.constant 0 : i32
    %c0_i32_0 = arith.constant 0 : i32
    return %arg0, %arg1, %c0_i32 : i32, i32, i32
  }
  func.func @transform_1(%arg0: i32, %arg1: i32) -> (i32, i32) {
    %c0_i32 = arith.constant 0 : i32
    %c0_i32_0 = arith.constant 0 : i32
    return %arg1, %c0_i32 : i32, i32
  }
  func.func @transform_2(%arg0: i32, %arg1: i32) -> (i32, i32) {
    %c0_i32 = arith.constant 0 : i32
    %c0_i32_0 = arith.constant 0 : i32
    %c0_i32_1 = arith.constant 0 : i32
    return %c0_i32, %c0_i32_0 : i32, i32
  }
  func.func @transform_3(%arg0: i32, %arg1: i32) -> (i32, i32) {
    %c0_i32 = arith.constant 0 : i32
    %c0_i32_0 = arith.constant 0 : i32
    %c0_i32_1 = arith.constant 0 : i32
    return %c0_i32, %c0_i32_0 : i32, i32
  }
  func.func @transform_4(%arg0: i32, %arg1: i32) -> (i32, i32) {
    %c0_i32 = arith.constant 0 : i32
    %c0_i32_0 = arith.constant 0 : i32
    %c0_i32_1 = arith.constant 0 : i32
    return %c0_i32, %c0_i32_0 : i32, i32
  }
  func.func @transform_5(%arg0: i32, %arg1: i32) -> (i32, i32) {
    %c0_i32 = arith.constant 0 : i32
    %c0_i32_0 = arith.constant 0 : i32
    %c0_i32_1 = arith.constant 0 : i32
    return %c0_i32, %c0_i32_0 : i32, i32
  }
  func.func @transform_6(%arg0: i32, %arg1: i32) -> (i32, i32) {
    %c0_i32 = arith.constant 0 : i32
    %c0_i32_0 = arith.constant 0 : i32
    %c0_i32_1 = arith.constant 0 : i32
    return %c0_i32, %c0_i32_0 : i32, i32
  }
  func.func @transform_7(%arg0: i32, %arg1: i32) -> (i32, i32) {
    %c0_i32 = arith.constant 0 : i32
    %c0_i32_0 = arith.constant 0 : i32
    %c0_i32_1 = arith.constant 0 : i32
    return %c0_i32, %c0_i32_0 : i32, i32
  }
  func.func @transform_8(%arg0: i32, %arg1: i32) -> (i32, i32, i32) {
    %c0_i32 = arith.constant 0 : i32
    %c0_i32_0 = arith.constant 0 : i32
    return %arg0, %arg1, %c0_i32 : i32, i32, i32
  }
}

</mosaic_0001>

<llo_original>
// kernel: tpu_custom_call.1
$region0: #{tpu_custom_call.1}
  #allocation0 [shape = 'u32[]', space=smem, size = 0x4, offset = 0x4, fixed_abs, tag = 'smem constant byte address 0x4 - core index']
  #allocation1 [shape = 'u32[144,128]{1,0:T(1,128)}', space=vmem, size = 0x12000, scoped, tag = 'internal scratch']
  %s0 = inlined_call_operand.vmem [shape: bf16[2,16,8], index: 0, kind: input, shape index: {}]
  %s1 = inlined_call_operand.vmem [shape: f32[16,12], index: 1, kind: input, shape index: {}]
  %s2 = inlined_call_operand.hbm [shape: bf16[8,32], index: 2, kind: input, shape index: {}]
  %s3 = inlined_call_operand.vmem [shape: f32[1,32], index: 3, kind: input, shape index: {}]
  %s4 = inlined_call_operand.vmem [shape: bf16[32,32], index: 4, kind: input, shape index: {}]
  %s5 = inlined_call_operand.vmem [shape: f32[1,32], index: 5, kind: input, shape index: {}]
  %s6 = inlined_call_operand.hbm [shape: bf16[32,128], index: 6, kind: input, shape index: {}]
  %s7 = inlined_call_operand.vmem [shape: f32[1,128], index: 7, kind: input, shape index: {}]
  %s8 = inlined_call_operand.hbm [shape: f32[2,16,128], index: 8, kind: output, shape index: {}]
  %s9 = sld [smem:[#allocation0]]
  $region73: #{tpu_custom_call.1} parent=0
    _
  %s11 = ssub.s32 1, %s9
  %s12 = scalar_select 0, %s11, %s9
  $region1: #{tpu_custom_call.1} parent=0
    #allocation2 [shape = 'u8[2048]{0}', space=vmem, size = 0x800, scoped, tag = 'input window, operand 2, single buffered']
    #allocation3 [shape = 's32[2]{0}', space=sflag, size = 0x8, scoped, tag = 'scoped memory for tpu_custom_call.1']
    #allocation4 [shape = 's32[2]{0}', space=sflag, size = 0x8, scoped, tag = 'scoped memory for tpu_custom_call.1']
    #allocation5 [shape = 'u8[8192]{0}', space=vmem, size = 0x2000, scoped, tag = 'input window, operand 6, single buffered']
    #allocation6 [shape = 's32[1]{0}', space=sflag, size = 0x4, scoped, tag = 'scoped memory for tpu_custom_call.1']
    #allocation7 [shape = 'u8[16384]{0}', space=vmem, size = 0x4000, scoped, tag = 'output window, operand 0']
    %13 = vsyncpa [#allocation3], 0
    %14 = vsyncpa [#allocation6], 0
    %15 = vsyncpa [#allocation4], 0
    %s16 = scalar_lea.sflag [#allocation4], 1
    %17 = vsyncpa %s16, 0
    loop: start=0, step=1, limit=4
    $region2: #{tpu_custom_call.1} parent=1 // loop_pre_header
      _
    $region3: #{tpu_custom_call.1} parent=1 // loop_header
      %s19 = sphi 0, %s23
      %p20 = scmp.ge.s32.totalorder %s19, 4
      %s26 = sphi 0, %s38
      %s27 = sphi 0, %s34
      %s28 = sphi 0, %s26
      %s29 = sphi 0, %s27
      %s30 = sphi 0, %s28
      %s31 = sphi 0, %s29
      %s43 = sphi 0, %s45
      %s46 = sphi 0, %s43
      %s47 = sphi 0, %s46
      %s63 = sphi 0, %s47
      %s69 = sphi 0, %s71
      %s72 = sphi 0, %s69
      %s73 = sphi 0, %s72
      %s89 = sphi 0, %s73
      %s93 = sphi 0, %s93
      %s95 = sphi 0, %s93
      %s96 = sphi 0, %s95
      %s110 = sphi 0, %s96
      %s114 = sphi 0, %s114
      %s116 = sphi 0, %s114
      %s117 = sphi 0, %s116
      %s131 = sphi 0, %s117
      %s135 = sphi 0, %s135
      %s137 = sphi 0, %s135
      %s138 = sphi 0, %s137
      %s152 = sphi 0, %s138
      %s156 = sphi 0, %s156
      %s158 = sphi 0, %s156
      %s159 = sphi 0, %s158
      %s173 = sphi 0, %s159
      %s177 = sphi 0, %s177
      %s179 = sphi 0, %s177
      %s180 = sphi 0, %s179
      %s194 = sphi 0, %s180
      %s198 = sphi 0, %s198
      %s200 = sphi 0, %s198
      %s201 = sphi 0, %s200
      %s215 = sphi 0, %s201
      %s223 = sphi 0, %s225
      %s226 = sphi 0, %s223
      %s227 = sphi 0, %s226
      %s243 = sphi 0, %s227
    $region4: #{tpu_custom_call.1} parent=1 // loop_header_branch
      %22 = sbr.rel (%p20) target = $region8
    $region5: #{tpu_custom_call.1} parent=1 // loop_body
      %s24 = ssub.s32 %s19, 1
      %s25 = ssub.s32 %s19, 2
      %s32 = sadd.s32 1, %s27
      %p33 = scmp.ge.s32.totalorder %s32, 1
      %s34 = scalar_select %p33, 0, %s32
      %s35 = sadd.s32 1, %s26
      %s36 = scalar_select %p33, %s35, %s26
      %p37 = scmp.ge.s32.totalorder %s36, 2
      %s38 = scalar_select %p37, 0, %s36
      %s39 = ssub.s32 %s26, %s38
      %s40 = ssub.s32 %s27, %s34
      %s41 = sor.u32 %s39, %s40
      %p42 = scmp.eq.s32.totalorder %s41, 0
      %s44 = sadd.s32 %s43, 1
      %s45 = scalar_select %p42, %s43, %s44
      %p48 = pneg %p42
      %p49 = scmp.eq.s32.totalorder %s19, 1
      %p50 = por %p48, %p49
      %p51 = scmp.ne.s32.totalorder %s43, %s46
      %p52 = scmp.eq.s32.totalorder %s19, 0
      %p53 = por %p51, %p52
      %p54 = scmp.ne.s32.totalorder %s43, %s46
      %p55 = scmp.eq.s32.totalorder %s24, 1
      %p56 = por %p54, %p55
      %p57 = scmp.ne.s32.totalorder %s46, %s47
      %p58 = scmp.eq.s32.totalorder %s24, 0
      %p59 = por %p57, %p58
      %p60 = scmp.ne.s32.totalorder %s46, %s47
      %p61 = scmp.eq.s32.totalorder %s25, 1
      %p62 = por %p60, %p61
      %p64 = scmp.ne.s32.totalorder %s47, %s63
      %p65 = scmp.eq.s32.totalorder %s25, 0
      %p66 = por %p64, %p65
      %s67 = ssub.s32 %s27, %s34
      %p68 = scmp.eq.s32.totalorder %s67, 0
      %s70 = sadd.s32 %s69, 1
      %s71 = scalar_select %p68, %s69, %s70
      %p74 = pneg %p68
      %p75 = scmp.eq.s32.totalorder %s19, 1
      %p76 = por %p74, %p75
      %p77 = scmp.ne.s32.totalorder %s69, %s72
      %p78 = scmp.eq.s32.totalorder %s19, 0
      %p79 = por %p77, %p78
      %p80 = scmp.ne.s32.totalorder %s69, %s72
      %p81 = scmp.eq.s32.totalorder %s24, 1
      %p82 = por %p80, %p81
      %p83 = scmp.ne.s32.totalorder %s72, %s73
      %p84 = scmp.eq.s32.totalorder %s24, 0
      %p85 = por %p83, %p84
      %p86 = scmp.ne.s32.totalorder %s72, %s73
      %p87 = scmp.eq.s32.totalorder %s25, 1
      %p88 = por %p86, %p87
      %p90 = scmp.ne.s32.totalorder %s73, %s89
      %p91 = scmp.eq.s32.totalorder %s25, 0
      %p92 = por %p90, %p91
      %s94 = sadd.s32 %s93, 1
      %p97 = scmp.eq.s32.totalorder %s19, 1
      %p98 = scmp.ne.s32.totalorder %s93, %s95
      %p99 = scmp.eq.s32.totalorder %s19, 0
      %p100 = por %p98, %p99
      %p101 = scmp.ne.s32.totalorder %s93, %s95
      %p102 = scmp.eq.s32.totalorder %s24, 1
      %p103 = por %p101, %p102
      %p104 = scmp.ne.s32.totalorder %s95, %s96
      %p105 = scmp.eq.s32.totalorder %s24, 0
      %p106 = por %p104, %p105
      %p107 = scmp.ne.s32.totalorder %s95, %s96
      %p108 = scmp.eq.s32.totalorder %s25, 1
      %p109 = por %p107, %p108
      %p111 = scmp.ne.s32.totalorder %s96, %s110
      %p112 = scmp.eq.s32.totalorder %s25, 0
      %p113 = por %p111, %p112
      %s115 = sadd.s32 %s114, 1
      %p118 = scmp.eq.s32.totalorder %s19, 1
      %p119 = scmp.ne.s32.totalorder %s114, %s116
      %p120 = scmp.eq.s32.totalorder %s19, 0
      %p121 = por %p119, %p120
      %p122 = scmp.ne.s32.totalorder %s114, %s116
      %p123 = scmp.eq.s32.totalorder %s24, 1
      %p124 = por %p122, %p123
      %p125 = scmp.ne.s32.totalorder %s116, %s117
      %p126 = scmp.eq.s32.totalorder %s24, 0
      %p127 = por %p125, %p126
      %p128 = scmp.ne.s32.totalorder %s116, %s117
      %p129 = scmp.eq.s32.totalorder %s25, 1
      %p130 = por %p128, %p129
      %p132 = scmp.ne.s32.totalorder %s117, %s131
      %p133 = scmp.eq.s32.totalorder %s25, 0
      %p134 = por %p132, %p133
      %s136 = sadd.s32 %s135, 1
      %p139 = scmp.eq.s32.totalorder %s19, 1
      %p140 = scmp.ne.s32.totalorder %s135, %s137
      %p141 = scmp.eq.s32.totalorder %s19, 0
      %p142 = por %p140, %p141
      %p143 = scmp.ne.s32.totalorder %s135, %s137
      %p144 = scmp.eq.s32.totalorder %s24, 1
      %p145 = por %p143, %p144
      %p146 = scmp.ne.s32.totalorder %s137, %s138
      %p147 = scmp.eq.s32.totalorder %s24, 0
      %p148 = por %p146, %p147
      %p149 = scmp.ne.s32.totalorder %s137, %s138
      %p150 = scmp.eq.s32.totalorder %s25, 1
      %p151 = por %p149, %p150
      %p153 = scmp.ne.s32.totalorder %s138, %s152
      %p154 = scmp.eq.s32.totalorder %s25, 0
      %p155 = por %p153, %p154
      %s157 = sadd.s32 %s156, 1
      %p160 = scmp.eq.s32.totalorder %s19, 1
      %p161 = scmp.ne.s32.totalorder %s156, %s158
      %p162 = scmp.eq.s32.totalorder %s19, 0
      %p163 = por %p161, %p162
      %p164 = scmp.ne.s32.totalorder %s156, %s158
      %p165 = scmp.eq.s32.totalorder %s24, 1
      %p166 = por %p164, %p165
      %p167 = scmp.ne.s32.totalorder %s158, %s159
      %p168 = scmp.eq.s32.totalorder %s24, 0
      %p169 = por %p167, %p168
      %p170 = scmp.ne.s32.totalorder %s158, %s159
      %p171 = scmp.eq.s32.totalorder %s25, 1
      %p172 = por %p170, %p171
      %p174 = scmp.ne.s32.totalorder %s159, %s173
      %p175 = scmp.eq.s32.totalorder %s25, 0
      %p176 = por %p174, %p175
      %s178 = sadd.s32 %s177, 1
      %p181 = scmp.eq.s32.totalorder %s19, 1
      %p182 = scmp.ne.s32.totalorder %s177, %s179
      %p183 = scmp.eq.s32.totalorder %s19, 0
      %p184 = por %p182, %p183
      %p185 = scmp.ne.s32.totalorder %s177, %s179
      %p186 = scmp.eq.s32.totalorder %s24, 1
      %p187 = por %p185, %p186
      %p188 = scmp.ne.s32.totalorder %s179, %s180
      %p189 = scmp.eq.s32.totalorder %s24, 0
      %p190 = por %p188, %p189
      %p191 = scmp.ne.s32.totalorder %s179, %s180
      %p192 = scmp.eq.s32.totalorder %s25, 1
      %p193 = por %p191, %p192
      %p195 = scmp.ne.s32.totalorder %s180, %s194
      %p196 = scmp.eq.s32.totalorder %s25, 0
      %p197 = por %p195, %p196
      %s199 = sadd.s32 %s198, 1
      %p202 = scmp.eq.s32.totalorder %s19, 1
      %p203 = scmp.ne.s32.totalorder %s198, %s200
      %p204 = scmp.eq.s32.totalorder %s19, 0
      %p205 = por %p203, %p204
      %p206 = scmp.ne.s32.totalorder %s198, %s200
      %p207 = scmp.eq.s32.totalorder %s24, 1
      %p208 = por %p206, %p207
      %p209 = scmp.ne.s32.totalorder %s200, %s201
      %p210 = scmp.eq.s32.totalorder %s24, 0
      %p211 = por %p209, %p210
      %p212 = scmp.ne.s32.totalorder %s200, %s201
      %p213 = scmp.eq.s32.totalorder %s25, 1
      %p214 = por %p212, %p213
      %p216 = scmp.ne.s32.totalorder %s201, %s215
      %p217 = scmp.eq.s32.totalorder %s25, 0
      %p218 = por %p216, %p217
      %s219 = ssub.s32 %s26, %s38
      %s220 = ssub.s32 %s27, %s34
      %s221 = sor.u32 %s219, %s220
      %p222 = scmp.eq.s32.totalorder %s221, 0
      %s224 = sadd.s32 %s223, 1
      %s225 = scalar_select %p222, %s223, %s224
      %p228 = pneg %p222
      %p229 = scmp.eq.s32.totalorder %s19, 1
      %p230 = por %p228, %p229
      %p231 = scmp.ne.s32.totalorder %s223, %s226
      %p232 = scmp.eq.s32.totalorder %s19, 0
      %p233 = por %p231, %p232
      %p234 = scmp.ne.s32.totalorder %s223, %s226
      %p235 = scmp.eq.s32.totalorder %s24, 1
      %p236 = por %p234, %p235
      %p237 = scmp.ne.s32.totalorder %s226, %s227
      %p238 = scmp.eq.s32.totalorder %s24, 0
      %p239 = por %p237, %p238
      %p240 = scmp.ne.s32.totalorder %s226, %s227
      %p241 = scmp.eq.s32.totalorder %s25, 1
      %p242 = por %p240, %p241
      %p244 = scmp.ne.s32.totalorder %s227, %s243
      %p245 = scmp.eq.s32.totalorder %s25, 0
      %p246 = por %p244, %p245
      %p247 = scmp.le.s32.totalorder 1, %s19
      %p248 = scmp.lt.s32.totalorder %s19, 3
      %p249 = pnand %p247, %p248
      %p250 = pneg %p249
      // Predicated region
      $region9: #{tpu_custom_call.1} parent=5 // pred_check
        _
      $region10: #{tpu_custom_call.1} parent=5 // pred_check_branch
        %252 = sbr.rel (%p249) target = $region12
      $region11: #{tpu_custom_call.1} parent=5 // pred_region
        %s253 = ssub.s32 %s19, 1
        // Predicated region
        $region13: #{tpu_custom_call.1} parent=11 // pred_check
          %p254 = pneg %p85
        $region14: #{tpu_custom_call.1} parent=11 // pred_check_branch
          %256 = sbr.rel (%p254) target = $region16
        $region15: #{tpu_custom_call.1} parent=11 // pred_region
          %s257 = smul.u32 2, %s29
          %p258 = scmp.lt.s32.totalorder %s257, 1
          %s259 = scalar_select %p258, %s257, 1
          %s260 = smul.addr %s259, 8
          %s261 = scalar_lea.vmem %s1, %s260
          %s262 = smul.u32 2, %s29
        $region16: #{tpu_custom_call.1} parent=11 // pred_fallthru
          _
        // Predicated region
        $region17: #{tpu_custom_call.1} parent=11 // pred_check
          %p263 = pneg %p106
        $region18: #{tpu_custom_call.1} parent=11 // pred_check_branch
          %265 = sbr.rel (%p263) target = $region20
        $region19: #{tpu_custom_call.1} parent=11 // pred_region
          %s267 = ssub.s32 64, 64
          %268 = vsyncadd [#allocation3], %s267
          %s270 = sshll.u32 [#allocation2], 4
          %s271 = int_to_ptr.vmem [resolvable:$true] %s270
          %273 = dma.hbm_to_vmem [thread:$0]  %s2, 64, %s271, [#allocation3]
        $region20: #{tpu_custom_call.1} parent=11 // pred_fallthru
          _
        // Predicated region
        $region21: #{tpu_custom_call.1} parent=11 // pred_check
          %p274 = pneg %p127
        $region22: #{tpu_custom_call.1} parent=11 // pred_check_branch
          %276 = sbr.rel (%p274) target = $region24
        $region23: #{tpu_custom_call.1} parent=11 // pred_region
          _
        $region24: #{tpu_custom_call.1} parent=11 // pred_fallthru
          _
        // Predicated region
        $region25: #{tpu_custom_call.1} parent=11 // pred_check
          %p277 = pneg %p148
        $region26: #{tpu_custom_call.1} parent=11 // pred_check_branch
          %279 = sbr.rel (%p277) target = $region28
        $region27: #{tpu_custom_call.1} parent=11 // pred_region
          _
        $region28: #{tpu_custom_call.1} parent=11 // pred_fallthru
          _
        // Predicated region
        $region29: #{tpu_custom_call.1} parent=11 // pred_check
          %p280 = pneg %p169
        $region30: #{tpu_custom_call.1} parent=11 // pred_check_branch
          %282 = sbr.rel (%p280) target = $region32
        $region31: #{tpu_custom_call.1} parent=11 // pred_region
          _
        $region32: #{tpu_custom_call.1} parent=11 // pred_fallthru
          _
        // Predicated region
        $region33: #{tpu_custom_call.1} parent=11 // pred_check
          %p283 = pneg %p190
        $region34: #{tpu_custom_call.1} parent=11 // pred_check_branch
          %285 = sbr.rel (%p283) target = $region36
        $region35: #{tpu_custom_call.1} parent=11 // pred_region
          %s287 = ssub.s32 256, 256
          %288 = vsyncadd [#allocation6], %s287
          %s289 = sshll.u32 [#allocation5], 4
          %s290 = int_to_ptr.vmem [resolvable:$true] %s289
          %295 = dma.hbm_to_vmem [thread:$0]  %s6, 256, %s290, [#allocation6], 64, 64, 4
        $region36: #{tpu_custom_call.1} parent=11 // pred_fallthru
          _
        // Predicated region
        $region37: #{tpu_custom_call.1} parent=11 // pred_check
          %p296 = pneg %p211
        $region38: #{tpu_custom_call.1} parent=11 // pred_check_branch
          %298 = sbr.rel (%p296) target = $region40
        $region39: #{tpu_custom_call.1} parent=11 // pred_region
          _
        $region40: #{tpu_custom_call.1} parent=11 // pred_fallthru
          _
      $region12: #{tpu_custom_call.1} parent=5 // pred_fallthru
        _
      %p299 = scmp.lt.s32.totalorder %s19, 2
      // Predicated region
      $region41: #{tpu_custom_call.1} parent=5 // pred_check
        %p300 = pneg %p299
      $region42: #{tpu_custom_call.1} parent=5 // pred_check_branch
        %302 = sbr.rel (%p300) target = $region44
      $region43: #{tpu_custom_call.1} parent=5 // pred_region
        // Predicated region
        $region45: #{tpu_custom_call.1} parent=43 // pred_check
          %p303 = pneg %p53
        $region46: #{tpu_custom_call.1} parent=43 // pred_check_branch
          %305 = sbr.rel (%p303) target = $region48
        $region47: #{tpu_custom_call.1} parent=43 // pred_region
          %s306 = smul.u32 2, %s27
          %p307 = scmp.lt.s32.totalorder %s26, 1
          %s308 = scalar_select %p307, %s26, 1
          %p309 = scmp.lt.s32.totalorder %s306, 1
          %s310 = scalar_select %p309, %s306, 1
          %s311 = smul.addr %s308, 2
          %s312 = sadd.s32 %s310, %s311
          %s313 = smul.addr %s312, 4
          %s314 = scalar_lea.vmem %s0, %s313
          %s315 = smul.u32 2, %s27
        $region48: #{tpu_custom_call.1} parent=43 // pred_fallthru
          _
      $region44: #{tpu_custom_call.1} parent=5 // pred_fallthru
        _
      %p316 = scmp.le.s32.totalorder 1, %s19
      %p317 = scmp.lt.s32.totalorder %s19, 3
      %p318 = pnand %p316, %p317
      %p319 = pneg %p318
      // Predicated region
      $region49: #{tpu_custom_call.1} parent=5 // pred_check
        _
      $region50: #{tpu_custom_call.1} parent=5 // pred_check_branch
        %321 = sbr.rel (%p318) target = $region52
      $region51: #{tpu_custom_call.1} parent=5 // pred_region
        %s322 = ssub.s32 %s19, 1
        // Predicated region
        $region53: #{tpu_custom_call.1} parent=51 // pred_check
          %p323 = pneg %p106
        $region54: #{tpu_custom_call.1} parent=51 // pred_check_branch
          %325 = sbr.rel (%p323) target = $region56
        $region55: #{tpu_custom_call.1} parent=51 // pred_region
          %326 = dma.done [#allocation3], 64
        $region56: #{tpu_custom_call.1} parent=51 // pred_fallthru
          _
        // Predicated region
        $region57: #{tpu_custom_call.1} parent=51 // pred_check
          %p327 = pneg %p190
        $region58: #{tpu_custom_call.1} parent=51 // pred_check_branch
          %329 = sbr.rel (%p327) target = $region60
        $region59: #{tpu_custom_call.1} parent=51 // pred_region
          %330 = dma.done [#allocation6], 256
        $region60: #{tpu_custom_call.1} parent=51 // pred_fallthru
          _
        %s331 = smul.u32 2, %s29
        %p332 = scmp.lt.s32.totalorder %s28, 1
        %s333 = scalar_select %p332, %s28, 1
        %p334 = scmp.lt.s32.totalorder %s331, 1
        %s335 = scalar_select %p334, %s331, 1
        %s336 = smul.addr %s333, 2
        %s337 = sadd.s32 %s335, %s336
        %s338 = smul.addr %s337, 4
        %s339 = scalar_lea.vmem %s0, %s338
        %p340 = pneg %p59
        %p341 = pneg %p56
        %s342 = smul.u32 2, %s29
        %p343 = scmp.lt.s32.totalorder %s342, 1
        %s344 = scalar_select %p343, %s342, 1
        %s345 = smul.addr %s344, 8
        %s346 = scalar_lea.vmem %s1, %s345
        %p347 = pneg %p85
        %p348 = pneg %p82
        %p349 = pneg %p106
        %p350 = pneg %p103
        %p351 = pneg %p127
        %p352 = pneg %p124
        %p353 = pneg %p148
        %p354 = pneg %p145
        %p355 = pneg %p169
        %p356 = pneg %p166
        %p357 = pneg %p190
        %p358 = pneg %p187
        %p359 = pneg %p211
        %p360 = pneg %p208
        %p361 = pneg %p239
        %p362 = pneg %p236
        %s363 = sand.u32 %s226, 1
        %s364 = scalar_lea.sflag [#allocation4], %s363
        %s365 = sand.u32 %s226, 1
        %s366 = smul.addr %s365, 16
        %s367 = scalar_lea.vmem [#allocation7], %s366
        %s368 = smul.u32 2, %s29
        %p369 = scmp.lt.s32.totalorder %s28, 1
        %s370 = scalar_select %p369, %s28, 1
        %p371 = scmp.lt.s32.totalorder %s368, 1
        %s372 = scalar_select %p371, %s368, 1
        %s373 = smul.addr %s370, 2
        %s374 = sadd.s32 %s372, %s373
        %s375 = smul.addr %s374, 4
        %s376 = scalar_lea.vmem %s0, %s375
        %s377 = smul.u32 2, %s29
        %s378 = smul.u32 2, %s29
        %p379 = scmp.lt.s32.totalorder %s378, 1
        %s380 = scalar_select %p379, %s378, 1
        %s381 = smul.addr %s380, 8
        %s382 = scalar_lea.vmem %s1, %s381
        %s383 = smul.u32 2, %s29
        %s384 = smul.u32 2, %s29
        %v386 = vld [vmem:[%s376] sm:$0xf]
        %v387 = vld [vmem:[%s376 + $0x4] sm:$0xf]
        %v388 = vld [vmem:[#allocation2] sm:$0xf]
        %v389 = vld [vmem:[%s3] sm:$0x1]
        %v391 = vlaneseq
        %v392 = vshrl.u32 %v391, 7
        %v393 = vsub.s32 0, %v392
        %v394 = vrot.slane %v389, %v393
        %v398 = vunpack.c.l.b16 %v386
        %v399 = vunpack.c.l.b16 %v387
        %v400 = vpack.c.b16 %v399, %v398
        %vm401 = vcmask 64512
        %v403 = vsel %vm401, %v400, 0
        %vm405 = vcmask 1043456
        %v407 = vsel %vm405, %v388, 0
        %409 = vmatprep.subr.bf16.mxu0 0
        %410 = vmatpush1.bf16.msra.mxu0 %v407
        %411 = vmatprep.subr.bf16.mxu0 0
        %412 = vmatpush1.bf16.msra.mxu0 0
        %413 = vmatprep.subr.bf16.mxu0 0
        %414 = vmatpush1.bf16.msra.mxu0 0
        %415 = vmatprep.subr.bf16.mxu0 0
        %416 = vmatpush1.bf16.msra.mxu0 0
        %417 = vmatprep.subr.bf16.mxu0 0
        %418 = vmatpush1.bf16.msra.mxu0 0
        %419 = vmatprep.subr.bf16.mxu0 0
        %420 = vmatpush1.bf16.msra.mxu0 0
        %421 = vmatprep.subr.bf16.mxu0 0
        %422 = vmatpush1.bf16.msra.mxu0 0
        %423 = vmatprep.subr.bf16.mxu0 0
        %424 = vmatpush1.bf16.msra.mxu0 0
        %425 = vmatprep.subr.bf16.mxu0 0
        %426 = vmatpush1.bf16.msra.mxu0 0
        %427 = vmatprep.subr.bf16.mxu0 0
        %428 = vmatpush1.bf16.msra.mxu0 0
        %429 = vmatprep.subr.bf16.mxu0 0
        %430 = vmatpush1.bf16.msra.mxu0 0
        %431 = vmatprep.subr.bf16.mxu0 0
        %432 = vmatpush1.bf16.msra.mxu0 0
        %433 = vmatprep.subr.bf16.mxu0 0
        %434 = vmatpush1.bf16.msra.mxu0 0
        %435 = vmatprep.subr.bf16.mxu0 0
        %436 = vmatpush1.bf16.msra.mxu0 0
        %437 = vmatprep.subr.bf16.mxu0 0
        %438 = vmatpush1.bf16.msra.mxu0 0
        %439 = vmatprep.subr.bf16.mxu0 0
        %440 = vmatpush1.bf16.msra.mxu0 0
        %441 = vmatprep.mubr.bf16.mxu0 0
        %442 = vmatmul.mubr.bf16.gmra.mrb[0].mxu0 %v403
        %v443 = vpop.f32.mrb[0].mxu0
        %v444 = vadd.f32 %v394, %v443
        %v445 = vpop.f32.mrb[0].mxu0
        %v446 = vpop.f32.mrb[0].mxu0
        %v447 = vadd.f32 %v394, %v446
        %v448 = vpop.f32.mrb[0].mxu0
        %449 = vdwg.mxu0
        %v450 = vmax.f32 %v444, 0.0
        %v451 = vmax.f32 %v447, 0.0
        %v452 = vpack.c.bf16 %v451, %v450
        %v453 = vld [vmem:[%s4] sm:$0xf]
        %v454 = vld [vmem:[%s4 + $0x4] sm:$0xf]
        %v455 = vld [vmem:[%s4 + $0x8] sm:$0xf]
        %v456 = vld [vmem:[%s4 + $0xc] sm:$0xf]
        %v457 = vld [vmem:[%s5] sm:$0x1]
        %v459 = vlaneseq
        %v460 = vshrl.u32 %v459, 7
        %v461 = vsub.s32 0, %v460
        %v462 = vrot.slane %v457, %v461
        %v468 = vunpack.c.l.b16 %v453
        %v469 = vunpack.c.l.b16 %v454
        %v470 = vunpack.c.l.b16 %v455
        %v471 = vunpack.c.l.b16 %v456
        %v472 = vpack.c.b16 %v469, %v468
        %v473 = vpack.c.b16 %v471, %v470
        %vm476 = vcmask 261120
        %v478 = vsel %vm476, %v452, 0
        %480 = vmatprep.subr.bf16.mxu0 0
        %481 = vmatpush1.bf16.msra.mxu0 %v472
        %482 = vmatprep.subr.bf16.mxu0 0
        %483 = vmatpush1.bf16.msra.mxu0 %v473
        %484 = vmatprep.subr.bf16.mxu0 0
        %485 = vmatpush1.bf16.msra.mxu0 0
        %486 = vmatprep.subr.bf16.mxu0 0
        %487 = vmatpush1.bf16.msra.mxu0 0
        %488 = vmatprep.subr.bf16.mxu0 0
        %489 = vmatpush1.bf16.msra.mxu0 0
        %490 = vmatprep.subr.bf16.mxu0 0
        %491 = vmatpush1.bf16.msra.mxu0 0
        %492 = vmatprep.subr.bf16.mxu0 0
        %493 = vmatpush1.bf16.msra.mxu0 0
        %494 = vmatprep.subr.bf16.mxu0 0
        %495 = vmatpush1.bf16.msra.mxu0 0
        %496 = vmatprep.subr.bf16.mxu0 0
        %497 = vmatpush1.bf16.msra.mxu0 0
        %498 = vmatprep.subr.bf16.mxu0 0
        %499 = vmatpush1.bf16.msra.mxu0 0
        %500 = vmatprep.subr.bf16.mxu0 0
        %501 = vmatpush1.bf16.msra.mxu0 0
        %502 = vmatprep.subr.bf16.mxu0 0
        %503 = vmatpush1.bf16.msra.mxu0 0
        %504 = vmatprep.subr.bf16.mxu0 0
        %505 = vmatpush1.bf16.msra.mxu0 0
        %506 = vmatprep.subr.bf16.mxu0 0
        %507 = vmatpush1.bf16.msra.mxu0 0
        %508 = vmatprep.subr.bf16.mxu0 0
        %509 = vmatpush1.bf16.msra.mxu0 0
        %510 = vmatprep.subr.bf16.mxu0 0
        %511 = vmatpush1.bf16.msra.mxu0 0
        %512 = vmatprep.mubr.bf16.mxu0 0
        %513 = vmatmul.mubr.bf16.gmra.mrb[0].mxu0 %v478
        %v514 = vpop.f32.mrb[0].mxu0
        %v515 = vadd.f32 %v462, %v514
        %v516 = vpop.f32.mrb[0].mxu0
        %v517 = vpop.f32.mrb[0].mxu0
        %v518 = vadd.f32 %v462, %v517
        %v519 = vpop.f32.mrb[0].mxu0
        %520 = vdwg.mxu0
        %vm521 = vcmp.gt.f32.partialorder %v515, 0.0
        %vm522 = vcmp.gt.f32.partialorder %v518, 0.0
        %v523 = vmul.f32 %v515, 0.1
        %v524 = vmul.f32 %v518, 0.1
        %v525 = vsel %vm521, %v515, %v523
        %v526 = vsel %vm522, %v518, %v524
        %v527 = vpack.c.bf16 %v526, %v525
        %v528 = vld [vmem:[#allocation5] sm:$0xf]
        %v529 = vld [vmem:[#allocation5 + $0x4] sm:$0xf]
        %v530 = vld [vmem:[#allocation5 + $0x8] sm:$0xf]
        %v531 = vld [vmem:[#allocation5 + $0xc] sm:$0xf]
        %v532 = vld [vmem:[%s7] sm:$0x1]
        %v534 = vlaneseq
        %v535 = vshrl.u32 %v534, 7
        %v536 = vsub.s32 0, %v535
        %v537 = vrot.slane %v532, %v536
        %v543 = vunpack.c.l.b16 %v528
        %v544 = vunpack.c.l.b16 %v529
        %v545 = vunpack.c.l.b16 %v530
        %v546 = vunpack.c.l.b16 %v531
        %v547 = vpack.c.b16 %v544, %v543
        %v548 = vpack.c.b16 %v546, %v545
        %v552 = vsel %vm476, %v527, 0
        %554 = vmatprep.subr.bf16.mxu0 0
        %555 = vmatpush1.bf16.msra.mxu0 %v547
        %556 = vmatprep.subr.bf16.mxu0 0
        %557 = vmatpush1.bf16.msra.mxu0 %v548
        %558 = vmatprep.subr.bf16.mxu0 0
        %559 = vmatpush1.bf16.msra.mxu0 0
        %560 = vmatprep.subr.bf16.mxu0 0
        %561 = vmatpush1.bf16.msra.mxu0 0
        %562 = vmatprep.subr.bf16.mxu0 0
        %563 = vmatpush1.bf16.msra.mxu0 0
        %564 = vmatprep.subr.bf16.mxu0 0
        %565 = vmatpush1.bf16.msra.mxu0 0
        %566 = vmatprep.subr.bf16.mxu0 0
        %567 = vmatpush1.bf16.msra.mxu0 0
        %568 = vmatprep.subr.bf16.mxu0 0
        %569 = vmatpush1.bf16.msra.mxu0 0
        %570 = vmatprep.subr.bf16.mxu0 0
        %571 = vmatpush1.bf16.msra.mxu0 0
        %572 = vmatprep.subr.bf16.mxu0 0
        %573 = vmatpush1.bf16.msra.mxu0 0
        %574 = vmatprep.subr.bf16.mxu0 0
        %575 = vmatpush1.bf16.msra.mxu0 0
        %576 = vmatprep.subr.bf16.mxu0 0
        %577 = vmatpush1.bf16.msra.mxu0 0
        %578 = vmatprep.subr.bf16.mxu0 0
        %579 = vmatpush1.bf16.msra.mxu0 0
        %580 = vmatprep.subr.bf16.mxu0 0
        %581 = vmatpush1.bf16.msra.mxu0 0
        %582 = vmatprep.subr.bf16.mxu0 0
        %583 = vmatpush1.bf16.msra.mxu0 0
        %584 = vmatprep.subr.bf16.mxu0 0
        %585 = vmatpush1.bf16.msra.mxu0 0
        %586 = vmatprep.mubr.bf16.mxu0 0
        %587 = vmatmul.mubr.bf16.gmra.mrb[0].mxu0 %v552
        %v588 = vpop.f32.mrb[0].mxu0
        %v589 = vadd.f32 %v537, %v588
        %v590 = vpop.f32.mrb[0].mxu0
        %v591 = vpop.f32.mrb[0].mxu0
        %v592 = vadd.f32 %v537, %v591
        %v593 = vpop.f32.mrb[0].mxu0
        %594 = vdwg.mxu0
        %v595 = vld [vmem:[%s382] sm:$0xff]
        %v596 = vld [vmem:[%s382 + $0x8] sm:$0xff]
        %v597 = vxor.u32 %v589, 2147483648
        %v598 = vxor.u32 %v592, 2147483648
        %v599 = vmul.f32 %v597, 1.442695
        %v600 = vpow.pop %v599
        %v601 = vmul.f32 %v598, 1.442695
        %v602 = vpow.pop %v601
        %v603 = vadd.f32 %v600, 1.0
        %v604 = vadd.f32 %v602, 1.0
        %v605 = vrcp.pop %v603
        %v606 = vmul.f32 1.0, %v605
        %v607 = vrcp.pop %v604
        %v608 = vmul.f32 1.0, %v607
        %v609 = vmul.f32 %v606, 8.0
        %v610 = vmul.f32 %v608, 8.0
        %613 = vrot.lane.b32.xlu0 %v595, 63
        %v614 = vpop.permute.xlu0 %613
        %615 = vrot.lane.b32.xlu0 %v596, 63
        %v616 = vpop.permute.xlu0 %615
        %v619 = vadd.f32 %v609, %v614
        %v620 = vadd.f32 %v610, %v616
        %v621 = vmin.f32 %v589, 20.0
        %v622 = vmin.f32 %v592, 20.0
        %v623 = vmul.f32 %v621, 1.442695
        %v624 = vpow.pop %v623
        %v625 = vmul.f32 %v622, 1.442695
        %v626 = vpow.pop %v625
        %v627 = vmul.f32 %v624, %v614
        %v628 = vmul.f32 %v626, %v616
        %v629 = vmul.f32 %v627, 0.5
        %v630 = vmul.f32 %v628, 0.5
        %633 = vrot.lane.b32.xlu0 %v629, 126
        %v634 = vpop.permute.xlu0 %633
        %635 = vrot.lane.b32.xlu0 %v630, 126
        %v636 = vpop.permute.xlu0 %635
        %v639 = vsub.f32 %v619, %v634
        %v640 = vsub.f32 %v620, %v636
        %v641 = vadd.f32 %v619, %v634
        %v642 = vadd.f32 %v620, %v636
        %645 = vrot.lane.b32.xlu0 %v639, 65
        %v646 = vpop.permute.xlu0 %645
        %647 = vrot.lane.b32.xlu0 %v640, 65
        %v648 = vpop.permute.xlu0 %647
        %653 = vrot.lane.b32.xlu0 %v641, 67
        %v654 = vpop.permute.xlu0 %653
        %655 = vrot.lane.b32.xlu0 %v642, 67
        %v656 = vpop.permute.xlu0 %655
        %vm659 = vcmask 15360
        %v660 = vsel %vm659, %v646, %v654
        %v661 = vsel %vm659, %v648, %v656
        %662 = vrot.lane.b32.xlu0 %v639, 61
        %v663 = vpop.permute.xlu0 %662
        %664 = vrot.lane.b32.xlu0 %v640, 61
        %v665 = vpop.permute.xlu0 %664
        %668 = vrot.lane.b32.xlu0 %v641, 63
        %v669 = vpop.permute.xlu0 %668
        %670 = vrot.lane.b32.xlu0 %v642, 63
        %v671 = vpop.permute.xlu0 %670
        %v674 = vsel %vm659, %v663, %v669
        %v675 = vsel %vm659, %v665, %v671
        %676 = vrot.lane.b32.xlu0 %v639, 57
        %v677 = vpop.permute.xlu0 %676
        %678 = vrot.lane.b32.xlu0 %v640, 57
        %v679 = vpop.permute.xlu0 %678
        %682 = vrot.lane.b32.xlu0 %v641, 59
        %v683 = vpop.permute.xlu0 %682
        %684 = vrot.lane.b32.xlu0 %v642, 59
        %v685 = vpop.permute.xlu0 %684
        %v688 = vsel %vm659, %v677, %v683
        %v689 = vsel %vm659, %v679, %v685
        %692 = vrot.lane.b32.xlu0 %v674, 4
        %v693 = vpop.permute.xlu0 %692
        %694 = vrot.lane.b32.xlu0 %v675, 4
        %v695 = vpop.permute.xlu0 %694
        %700 = vrot.lane.b32.xlu0 %v688, 8
        %v701 = vpop.permute.xlu0 %700
        %702 = vrot.lane.b32.xlu0 %v689, 8
        %v703 = vpop.permute.xlu0 %702
        %vm706 = vcmask 31744
        %v707 = vsel %vm706, %v660, %v693
        %v708 = vsel %vm706, %v661, %v695
        %v709 = vsel %vm401, %v707, %v701
        %v710 = vsel %vm401, %v708, %v703
        %713 = vrot.lane.b32.xlu0 %v709, 75
        %v714 = vpop.permute.xlu0 %713
        %715 = vrot.lane.b32.xlu0 %v710, 75
        %v716 = vpop.permute.xlu0 %715
        %vm719 = vcmask 613376
        %v720 = vsel %vm719, %v589, %v714
        %v721 = vsel %vm719, %v592, %v716
        %vm722 = vcmask 711680
        %v723 = vsel %vm722, %v720, 0.0
        %v724 = vsel %vm722, %v721, 0.0
        %725 = vst [vmem:[%s367] sm:$0xff] %v723
        %726 = vst [vmem:[%s367 + $0x8] sm:$0xff] %v724
        %s727 = sand.u32 %s226, 1
        %s728 = scalar_lea.sflag [#allocation4], %s727
        %s729 = sand.u32 %s226, 1
        %s730 = smul.addr %s729, 16
        %s731 = scalar_lea.vmem [#allocation7], %s730
        // Predicated region
        $region61: #{tpu_custom_call.1} parent=51 // pred_check
          %p732 = pneg %p236
        $region62: #{tpu_custom_call.1} parent=51 // pred_check_branch
          %734 = sbr.rel (%p732) target = $region64
        $region63: #{tpu_custom_call.1} parent=51 // pred_region
          %s735 = smul.u32 2, %s29
          %s737 = ssub.s32 256, 256
          %738 = vsyncadd %s728, %s737
          %s739 = smul.addr %s28, 2
          %s740 = sadd.s32 %s735, %s739
          %s741 = smul.addr %s740, 128
          %s742 = scalar_lea.hbm %s8, %s741
          %s743 = sshll.u32 %s731, 4
          %s744 = int_to_ptr.vmem [resolvable:$true] %s743
          %749 = dma.vmem_to_hbm [thread:$0]  %s744, 256, %s742, %s728, 128, 128, 8
        $region64: #{tpu_custom_call.1} parent=51 // pred_fallthru
          _
      $region52: #{tpu_custom_call.1} parent=5 // pred_fallthru
        _
      %p750 = scmp.le.s32.totalorder 2, %s19
      // Predicated region
      $region65: #{tpu_custom_call.1} parent=5 // pred_check
        %p751 = pneg %p750
      $region66: #{tpu_custom_call.1} parent=5 // pred_check_branch
        %753 = sbr.rel (%p751) target = $region68
      $region67: #{tpu_custom_call.1} parent=5 // pred_region
        %s754 = ssub.s32 %s19, 2
        // Predicated region
        $region69: #{tpu_custom_call.1} parent=67 // pred_check
          %p755 = pneg %p242
        $region70: #{tpu_custom_call.1} parent=67 // pred_check_branch
          %757 = sbr.rel (%p755) target = $region72
        $region71: #{tpu_custom_call.1} parent=67 // pred_region
          %s758 = sand.u32 %s227, 1
          %s759 = scalar_lea.sflag [#allocation4], %s758
          %s760 = sand.u32 %s227, 1
          %s761 = smul.addr %s760, 16
          %s762 = scalar_lea.vmem [#allocation7], %s761
          %763 = dma.done %s759, 256
        $region72: #{tpu_custom_call.1} parent=67 // pred_fallthru
          _
      $region68: #{tpu_custom_call.1} parent=5 // pred_fallthru
        _
    $region6: #{tpu_custom_call.1} parent=1 // loop_footer
      %s23 = sadd.s32 1, %s19
    $region7: #{tpu_custom_call.1} parent=1 // loop_footer_branch
      %18 = sbr.rel target = $region3
    $region8: #{tpu_custom_call.1} parent=1 // loop_exit
      _
    %764 = vsyncpa [#allocation3], 1
    %s765 = scalar_lea.sflag [#allocation3], 1
    %766 = vsyncpa %s765, 1
    %767 = vsyncpa [#allocation6], 1
    %768 = vsyncpa [#allocation4], 1
    %s769 = scalar_lea.sflag [#allocation4], 1
    %770 = vsyncpa %s769, 1

</llo_original>
